<compile_context>
chip_gen: v5e
topology: v5e:2x2
jax: 0.10.0
libtpu: 0.0.40
codegen_flags: <defaults>
</compile_context>

<pallas_src>
import math
import functools

import jax
import jax.numpy as jnp
from jax.experimental import pallas as pl
from jax.experimental.pallas import tpu as pltpu


# ---------------------------------------------------------------------------
# VMEM budgeting / tile selection.
# TODO(synk): pad S to a tile multiple instead of falling back to full-dim
#             blocks when S has no friendly divisor (full-dim blocks can blow
#             VMEM for very long sequences, especially on v7x's 64 MiB).
# ---------------------------------------------------------------------------
_TILE_BUDGET = 40 * 1024 * 1024          # v7x-safe per-step VMEM target


def _vmem_limit(estimate_bytes):
    """Scoped-VMEM request computed from actual usage (not a blanket 64 MiB)."""
    return int(min(max(estimate_bytes + (8 << 20), 32 << 20), 96 << 20))


def _qkv_vmem_estimate(tm, hidden):
    blocks = 2 * (tm * hidden * 4 + 3 * tm * hidden * 2)        # x f32 + 3 bf16 outs (x2 buf)
    weights = 2 * (hidden * 3 * hidden * 2 + 3 * hidden * 4)    # fused W/b (double-buffered)
    temps = tm * 3 * hidden * 4                                  # f32 qkv accumulator
    return blocks + weights + temps


def _attn_vmem_estimate(head_num, d, tq, tk, out_bytes):
    hidden = head_num * d
    blocks = 2 * (tq * hidden * 2 + 2 * tk * hidden * 2 + tq * tk * 1
                  + tq * hidden * out_bytes)                     # double-buffered blocks
    scratch = 2 * head_num * tq * 128 * 4 + head_num * tq * d * 4   # m/l lane-padded + acc
    temps = head_num * tq * tk * (4 + 4 + 2)                     # s, p (f32) + p bf16 cast
    return blocks + scratch + temps


def _pick_row_tile(seq, hidden):
    cand = [t for t in (512, 256, 128, 64, 32, 16) if t < seq and seq % t == 0]
    cand = ([seq] if seq <= 512 else []) + cand
    if not cand:
        cand = [seq]
    for tm in cand:
        if _qkv_vmem_estimate(tm, hidden) <= _TILE_BUDGET:
            return tm
    return cand[-1]


def _pick_attn_tiles(seq, head_num, d, out_bytes):
    # q tile: multiple of 32 sublanes (int8 mask block) or the full sequence.
    q_cand = [t for t in (512, 256, 128, 64, 32) if t < seq and seq % t == 0]
    q_cand = ([seq] if seq <= 512 else []) + q_cand
    if not q_cand:
        q_cand = [seq]
    # kv tile: lane dim of the mask block -> multiple of 128 or the full sequence.
    k_cand = [t for t in (512, 384, 256, 128) if t < seq and seq % t == 0]
    k_cand = ([seq] if seq <= 512 else []) + k_cand
    if not k_cand:
        k_cand = [seq]
    for tq in q_cand:                       # prefer large tq: halves K/V re-reads
        for tk in k_cand:
            if _attn_vmem_estimate(head_num, d, tq, tk, out_bytes) <= _TILE_BUDGET:
                return tq, tk
    return q_cand[-1], k_cand[-1]


# ---------------------------------------------------------------------------
# Kernel 1: fused QKV projection (bf16 MXU, f32 accumulate), head-major output.
# ---------------------------------------------------------------------------
def _qkv_proj_kernel(x_ref, w_ref, b_ref, q_ref, k_ref, v_ref, *, hidden, head_num):
    x = x_ref[0].astype(jnp.bfloat16)                      # (tm, H); cast in-kernel
    qkv = jnp.dot(x, w_ref[...], preferred_element_type=jnp.float32) + b_ref[...]
    d = hidden // head_num
    # Write q/k/v directly in head-major (heads, tm, d) layout so the attention
    # kernel needs no XLA transposes (and no extra HBM round trips) in between.
    for h in range(head_num):
        q_ref[0, h] = qkv[:, 0 * hidden + h * d:0 * hidden + (h + 1) * d].astype(q_ref.dtype)
        k_ref[0, h] = qkv[:, 1 * hidden + h * d:1 * hidden + (h + 1) * d].astype(k_ref.dtype)
        v_ref[0, h] = qkv[:, 2 * hidden + h * d:2 * hidden + (h + 1) * d].astype(v_ref.dtype)


# ---------------------------------------------------------------------------
# Kernel 2: flash attention with online softmax, heads batched on the MXU,
#           in-kernel int8 mask, fully-masked kv tiles skipped via SMEM flags.
# ---------------------------------------------------------------------------
def _flash_attn_kernel(flags_ref, q_ref, k_ref, v_ref, mask_ref, o_ref,
                       m_sc, l_sc, acc_sc, *, head_num):
    b, qi, ki = pl.program_id(0), pl.program_id(1), pl.program_id(2)
    nq, nk = pl.num_programs(1), pl.num_programs(2)

    @pl.when(ki == 0)
    def _():
        m_sc[...] = jnp.full_like(m_sc, -jnp.inf)
        l_sc[...] = jnp.zeros_like(l_sc)
        acc_sc[...] = jnp.zeros_like(acc_sc)

    # Skip kv tiles with no work to do (see flag construction in the wrapper).
    run = flags_ref[(b * nq + qi) * nk + ki] != 0

    @pl.when(run)
    def _():
        q = q_ref[0]                                       # (heads, tq, d) bf16
        k = k_ref[0]                                       # (heads, tk, d) bf16
        v = v_ref[0]                                       # (heads, tk, d) bf16

        # All heads on the MXU at once; 1/sqrt(hidden) is folded into Wq/bq.
        s = jnp.einsum('hqd,hkd->hqk', q, k,
                       preferred_element_type=jnp.float32)  # (heads, tq, tk) f32
        # Exact masked_fill(-1e9): broadcast the int8 mask (as f32) over heads.
        m2 = jnp.broadcast_to(mask_ref[0].astype(jnp.float32), s.shape)
        s = jnp.where(m2 != 0, jnp.float32(-1e9), s)

        m_prev = m_sc[...]
        m_new = jnp.maximum(m_prev, jnp.max(s, axis=-1, keepdims=True))
        alpha = jnp.exp(m_prev - m_new)
        p = jnp.exp(s - m_new)
        l_sc[...] = alpha * l_sc[...] + jnp.sum(p, axis=-1, keepdims=True)
        pv = jnp.einsum('hqk,hkd->hqd', p.astype(v.dtype), v,
                        preferred_element_type=jnp.float32)
        acc_sc[...] = alpha * acc_sc[...] + pv
        m_sc[...] = m_new

    @pl.when(ki == nk - 1)
    def _():
        inv_l = pl.reciprocal(l_sc[...], approx=False)
        out = acc_sc[...] * inv_l                          # (heads, tq, d) f32
        # Single lane-dense (tq, H) store (heads concatenated along lanes).
        # TODO(synk): replace the per-head concat with a single transpose+reshape
        #             relayout once Mosaic 3-D transpose support is confirmed.
        o_ref[0] = jnp.concatenate(
            [out[h] for h in range(head_num)], axis=-1).astype(o_ref.dtype)


# ---------------------------------------------------------------------------
# Wrapper
# ---------------------------------------------------------------------------
def multi_head_attention(x, mask_bool, params, head_num, out_dtype=jnp.float32):
    """x: (B, S, H) f32; mask_bool: (B, S, S) bool (True = masked) -> (B, S, H)."""
    B, S, H = x.shape
    assert H % head_num == 0
    d = H // head_num
    # NOTE: reference scales by 1/sqrt(hidden_state), NOT 1/sqrt(d_head). Keep it.
    scale = 1.0 / math.sqrt(float(H))

    # Fused (in, 3*out) weight with the score scale folded into the Q columns.
    w_qkv = jnp.concatenate(
        [params["wq"].T * scale, params["wk"].T, params["wv"].T],
        axis=1).astype(jnp.bfloat16)                                   # (H, 3H)
    b_qkv = jnp.concatenate(
        [params["bq"] * scale, params["bk"], params["bv"]]
    ).reshape(1, 3 * H).astype(jnp.float32)                            # (1, 3H)

    # --- Kernel 1: QKV projection, head-major (B, heads, S, d) bf16 outputs ---
    tm = _pick_row_tile(S, H)
    qkv_shape = jax.ShapeDtypeStruct((B, head_num, S, d), jnp.bfloat16)
    # TODO(synk): single-buffer the resident fused weight (pl.Buffered(1)) or
    #             tile the 3H output dim so very large H fits v7x's 64 MiB VMEM.
    proj = pl.pallas_call(
        functools.partial(_qkv_proj_kernel, hidden=H, head_num=head_num),
        out_shape=(qkv_shape, qkv_shape, qkv_shape),
        grid_spec=pltpu.PrefetchScalarGridSpec(
            num_scalar_prefetch=0,
            grid=(B, S // tm),
            in_specs=[
                pl.BlockSpec((1, tm, H), lambda b, i: (b, i, 0)),      # x (f32)
                pl.BlockSpec((H, 3 * H), lambda b, i: (0, 0)),         # fused W
                pl.BlockSpec((1, 3 * H), lambda b, i: (0, 0)),         # fused b
            ],
            out_specs=[pl.BlockSpec((1, head_num, tm, d),
                                    lambda b, i: (b, 0, i, 0))] * 3,
        ),
        compiler_params=pltpu.CompilerParams(
            dimension_semantics=("parallel", "parallel"),
            vmem_limit_bytes=_vmem_limit(_qkv_vmem_estimate(tm, H))),
        cost_estimate=pl.CostEstimate(
            flops=2 * B * S * H * 3 * H,
            transcendentals=0,
            bytes_accessed=B * S * H * 4 + H * 3 * H * 2 + 3 * H * 4 + 3 * B * S * H * 2),
    )
    qh, kh, vh = proj(x, w_qkv, b_qkv)

    # --- Kernel 2: flash attention over kv tiles -------------------------------
    out_bytes = jnp.dtype(out_dtype).itemsize
    tq, tk = _pick_attn_tiles(S, head_num, d, out_bytes)
    nq, nk = S // tq, S // tk

    # int8 mask streamed straight into the kernel (1 B/elem; no bf16 bias pass).
    mask_i8 = mask_bool.astype(jnp.int8)

    # Scalar-prefetched per-(b, q-tile, kv-tile) flags.  A fully masked kv tile
    # is skipped unless its q tile contains a fully-masked row (then all tiles
    # run so that row keeps the reference's softmax-over--1e9 behaviour).  For
    # rows with any unmasked key the skip is numerically identical.
    tile_all_masked = jnp.all(
        mask_bool.reshape(B, nq, tq, nk, tk), axis=(2, 4))             # (B, nq, nk)
    row_dead = jnp.all(mask_bool, axis=-1)                             # (B, S)
    qtile_dead = jnp.any(row_dead.reshape(B, nq, tq), axis=-1)         # (B, nq)
    flags = jnp.logical_or(~tile_all_masked, qtile_dead[:, :, None])
    flags = flags.astype(jnp.int32).reshape(-1)                        # (B*nq*nk,)

    attn = pl.pallas_call(
        functools.partial(_flash_attn_kernel, head_num=head_num),
        out_shape=jax.ShapeDtypeStruct((B, S, H), out_dtype),
        grid_spec=pltpu.PrefetchScalarGridSpec(
            num_scalar_prefetch=1,
            grid=(B, nq, nk),
            in_specs=[
                pl.BlockSpec((1, head_num, tq, d), lambda b, qi, ki, sp: (b, 0, qi, 0)),
                pl.BlockSpec((1, head_num, tk, d), lambda b, qi, ki, sp: (b, 0, ki, 0)),
                pl.BlockSpec((1, head_num, tk, d), lambda b, qi, ki, sp: (b, 0, ki, 0)),
                pl.BlockSpec((1, tq, tk), lambda b, qi, ki, sp: (b, qi, ki)),
            ],
            out_specs=pl.BlockSpec((1, tq, H), lambda b, qi, ki, sp: (b, qi, 0)),
            scratch_shapes=[
                pltpu.VMEM((head_num, tq, 1), jnp.float32),   # running max
                pltpu.VMEM((head_num, tq, 1), jnp.float32),   # running denom
                pltpu.VMEM((head_num, tq, d), jnp.float32),   # output accumulator
            ],
        ),
        compiler_params=pltpu.CompilerParams(
            dimension_semantics=("parallel", "parallel", "arbitrary"),
            vmem_limit_bytes=_vmem_limit(
                _attn_vmem_estimate(head_num, d, tq, tk, out_bytes))),
        cost_estimate=pl.CostEstimate(
            flops=4 * B * head_num * S * S * d,
            transcendentals=B * head_num * S * S,
            bytes_accessed=(3 * B * S * H * 2 + B * S * S * 1
                            + B * S * H * out_bytes)),
    )
    return attn(flags, qh, kh, vh, mask_i8)


# ---------------------------------------------------------------------------
# Pure-JAX reference mirroring the PyTorch forward exactly.
# ---------------------------------------------------------------------------
def _reference(x, mask_bool, params, head_num):
    B, S, H = x.shape
    d = H // head_num
    hi = jax.lax.Precision.HIGHEST

    def linear(x, w, b):      # PyTorch Linear: x @ W^T + b, W: (out, in)
        return jnp.einsum("bsh,oh->bso", x, w, precision=hi) + b

    q = linear(x, params["wq"], params["bq"]).reshape(B, S, head_num, d).transpose(0, 2, 1, 3)
    k = linear(x, params["wk"], params["bk"]).reshape(B, S, head_num, d).transpose(0, 2, 1, 3)
    v = linear(x, params["wv"], params["bv"]).reshape(B, S, head_num, d).transpose(0, 2, 1, 3)

    w = jnp.einsum("bhqd,bhkd->bhqk", q, k, precision=hi) / jnp.sqrt(jnp.float32(H))
    w = jnp.where(mask_bool[:, None, :, :], jnp.float32(-1e9), w)
    p = jax.nn.softmax(w, axis=3)
    o = jnp.einsum("bhqk,bhkd->bhqd", p, v, precision=hi)
    return o.transpose(0, 2, 1, 3).reshape(B, S, H)


def _init_params(key, hidden):
    """nn.Linear default init: U(-1/sqrt(in), 1/sqrt(in))."""
    ks = jax.random.split(key, 6)
    bound = 1.0 / math.sqrt(hidden)
    u = lambda k, shape: jax.random.uniform(k, shape, jnp.float32, -bound, bound)
    return {
        "wq": u(ks[0], (hidden, hidden)), "bq": u(ks[1], (hidden,)),
        "wk": u(ks[2], (hidden, hidden)), "bk": u(ks[3], (hidden,)),
        "wv": u(ks[4], (hidden, hidden)), "bv": u(ks[5], (hidden,)),
    }


if __name__ == "__main__":
    B, S, H, HEADS = 2, 8, 32, 4

    key = jax.random.PRNGKey(0)
    kx, km, kp = jax.random.split(key, 3)

    x = jax.random.normal(kx, (B, S, H), jnp.float32)
    # Random boolean mask (True = masked). Clear the diagonal so every row has
    # at least one unmasked key (matching masked_fill semantics; fully-masked
    # rows are a degenerate case handled via the "run all tiles" flag path).
    mask_bool = jax.random.bernoulli(km, p=0.25, shape=(B, S, S))
    mask_bool = mask_bool & (~jnp.eye(S, dtype=bool))[None, :, :]

    params = _init_params(kp, H)

    out = multi_head_attention(x, mask_bool, params, HEADS)
    out = jax.block_until_ready(out)

    ref = _reference(x, mask_bool, params, HEADS)
    # bf16 MXU operands (f32 accumulation) -> loosened tolerance vs f32 reference.
    if not jnp.allclose(out, ref, atol=3e-2, rtol=3e-2):
        raise AssertionError(
            f"Pallas kernel mismatch vs reference: max abs err "
            f"{float(jnp.max(jnp.abs(out - ref)))}")

    print("KERNEL_OK")
</pallas_src>

<mosaic_0001>
module attributes {stable_mosaic.version = 11 : i64} {
  func.func @_qkv_proj_kernel(%arg0: i32, %arg1: i32, %arg2: memref<1x8x32xf32, #tpu.memory_space<vmem>>, %arg3: memref<32x96xbf16, #tpu.memory_space<vmem>>, %arg4: memref<1x96xf32, #tpu.memory_space<vmem>>, %arg5: memref<1x4x8x8xbf16, #tpu.memory_space<vmem>>, %arg6: memref<1x4x8x8xbf16, #tpu.memory_space<vmem>>, %arg7: memref<1x4x8x8xbf16, #tpu.memory_space<vmem>>) attributes {dimension_semantics = [#tpu.dimension_semantics<parallel>, #tpu.dimension_semantics<parallel>], iteration_bounds = array<i64: 2, 1>, scalar_prefetch = 0 : i64, scratch_operands = 0 : i64, tpu.core_type = #tpu.core_type<tc>, window_params = [{transform_indices = @transform_0, window_bounds = array<i64: 1, 8, 32>}, {pipeline_mode = #tpu.pipeline_mode<synchronous>, transform_indices = @transform_1, window_bounds = array<i64: 32, 96>}, {pipeline_mode = #tpu.pipeline_mode<synchronous>, transform_indices = @transform_2, window_bounds = array<i64: 1, 96>}, {transform_indices = @transform_3, window_bounds = array<i64: 1, 4, 8, 8>}, {transform_indices = @transform_4, window_bounds = array<i64: 1, 4, 8, 8>}, {transform_indices = @transform_5, window_bounds = array<i64: 1, 4, 8, 8>}]} {
    %c0 = arith.constant 0 : index
    %c0_0 = arith.constant 0 : index
    %c0_1 = arith.constant 0 : index
    %0 = vector.load %arg2[%c0, %c0_0, %c0_1] : memref<1x8x32xf32, #tpu.memory_space<vmem>>, vector<1x8x32xf32>
    %1 = vector.shape_cast %0 : vector<1x8x32xf32> to vector<8x32xf32>
    %2 = arith.truncf %1 : vector<8x32xf32> to vector<8x32xbf16>
    %c0_2 = arith.constant 0 : index
    %c0_3 = arith.constant 0 : index
    %3 = vector.load %arg3[%c0_2, %c0_3] : memref<32x96xbf16, #tpu.memory_space<vmem>>, vector<32x96xbf16>
    %cst = arith.constant dense<0.000000e+00> : vector<8x96xf32>
    %4 = tpu.matmul %2, %3, %cst {dimension_numbers = #tpu.dot_dimension_numbers<[1], [0], [0], [1], [0, 0, 1, 1], [], []>} : vector<8x32xbf16>, vector<32x96xbf16>, vector<8x96xf32> -> vector<8x96xf32>
    %c0_4 = arith.constant 0 : index
    %c0_5 = arith.constant 0 : index
    %5 = vector.load %arg4[%c0_4, %c0_5] : memref<1x96xf32, #tpu.memory_space<vmem>>, vector<1x96xf32>
    %6 = vector.broadcast %5 : vector<1x96xf32> to vector<8x96xf32>
    %7 = arith.addf %4, %6 : vector<8x96xf32>
    %8 = vector.extract_strided_slice %7 {offsets = [0, 0], sizes = [8, 8], strides = [1, 1]} : vector<8x96xf32> to vector<8x8xf32>
    %9 = arith.truncf %8 : vector<8x8xf32> to vector<8x8xbf16>
    %c0_6 = arith.constant 0 : index
    %c0_7 = arith.constant 0 : index
    %c0_8 = arith.constant 0 : index
    %c0_9 = arith.constant 0 : index
    %10 = vector.load %arg5[%c0_6, %c0_7, %c0_8, %c0_9] : memref<1x4x8x8xbf16, #tpu.memory_space<vmem>>, vector<1x1x8x8xbf16>
    %11 = vector.shape_cast %10 : vector<1x1x8x8xbf16> to vector<8x8xbf16>
    %12 = vector.shape_cast %9 : vector<8x8xbf16> to vector<1x1x8x8xbf16>
    tpu.vector_store %arg5[%c0_6, %c0_7, %c0_8, %c0_9], %12 {strides = array<i32>} : memref<1x4x8x8xbf16, #tpu.memory_space<vmem>>, vector<1x1x8x8xbf16>,
    %13 = vector.extract_strided_slice %7 {offsets = [0, 32], sizes = [8, 8], strides = [1, 1]} : vector<8x96xf32> to vector<8x8xf32>
    %14 = arith.truncf %13 : vector<8x8xf32> to vector<8x8xbf16>
    %c0_10 = arith.constant 0 : index
    %c0_11 = arith.constant 0 : index
    %c0_12 = arith.constant 0 : index
    %c0_13 = arith.constant 0 : index
    %15 = vector.load %arg6[%c0_10, %c0_11, %c0_12, %c0_13] : memref<1x4x8x8xbf16, #tpu.memory_space<vmem>>, vector<1x1x8x8xbf16>
    %16 = vector.shape_cast %15 : vector<1x1x8x8xbf16> to vector<8x8xbf16>
    %17 = vector.shape_cast %14 : vector<8x8xbf16> to vector<1x1x8x8xbf16>
    tpu.vector_store %arg6[%c0_10, %c0_11, %c0_12, %c0_13], %17 {strides = array<i32>} : memref<1x4x8x8xbf16, #tpu.memory_space<vmem>>, vector<1x1x8x8xbf16>,
    %18 = vector.extract_strided_slice %7 {offsets = [0, 64], sizes = [8, 8], strides = [1, 1]} : vector<8x96xf32> to vector<8x8xf32>
    %19 = arith.truncf %18 : vector<8x8xf32> to vector<8x8xbf16>
    %c0_14 = arith.constant 0 : index
    %c0_15 = arith.constant 0 : index
    %c0_16 = arith.constant 0 : index
    %c0_17 = arith.constant 0 : index
    %20 = vector.load %arg7[%c0_14, %c0_15, %c0_16, %c0_17] : memref<1x4x8x8xbf16, #tpu.memory_space<vmem>>, vector<1x1x8x8xbf16>
    %21 = vector.shape_cast %20 : vector<1x1x8x8xbf16> to vector<8x8xbf16>
    %22 = vector.shape_cast %19 : vector<8x8xbf16> to vector<1x1x8x8xbf16>
    tpu.vector_store %arg7[%c0_14, %c0_15, %c0_16, %c0_17], %22 {strides = array<i32>} : memref<1x4x8x8xbf16, #tpu.memory_space<vmem>>, vector<1x1x8x8xbf16>,
    %23 = vector.extract_strided_slice %7 {offsets = [0, 8], sizes = [8, 8], strides = [1, 1]} : vector<8x96xf32> to vector<8x8xf32>
    %24 = arith.truncf %23 : vector<8x8xf32> to vector<8x8xbf16>
    %c0_18 = arith.constant 0 : index
    %c1 = arith.constant 1 : index
    %c0_19 = arith.constant 0 : index
    %c0_20 = arith.constant 0 : index
    %25 = vector.load %arg5[%c0_18, %c1, %c0_19, %c0_20] : memref<1x4x8x8xbf16, #tpu.memory_space<vmem>>, vector<1x1x8x8xbf16>
    %26 = vector.shape_cast %25 : vector<1x1x8x8xbf16> to vector<8x8xbf16>
    %27 = vector.shape_cast %24 : vector<8x8xbf16> to vector<1x1x8x8xbf16>
    tpu.vector_store %arg5[%c0_18, %c1, %c0_19, %c0_20], %27 {strides = array<i32>} : memref<1x4x8x8xbf16, #tpu.memory_space<vmem>>, vector<1x1x8x8xbf16>,
    %28 = vector.extract_strided_slice %7 {offsets = [0, 40], sizes = [8, 8], strides = [1, 1]} : vector<8x96xf32> to vector<8x8xf32>
    %29 = arith.truncf %28 : vector<8x8xf32> to vector<8x8xbf16>
    %c0_21 = arith.constant 0 : index
    %c1_22 = arith.constant 1 : index
    %c0_23 = arith.constant 0 : index
    %c0_24 = arith.constant 0 : index
    %30 = vector.load %arg6[%c0_21, %c1_22, %c0_23, %c0_24] : memref<1x4x8x8xbf16, #tpu.memory_space<vmem>>, vector<1x1x8x8xbf16>
    %31 = vector.shape_cast %30 : vector<1x1x8x8xbf16> to vector<8x8xbf16>
    %32 = vector.shape_cast %29 : vector<8x8xbf16> to vector<1x1x8x8xbf16>
    tpu.vector_store %arg6[%c0_21, %c1_22, %c0_23, %c0_24], %32 {strides = array<i32>} : memref<1x4x8x8xbf16, #tpu.memory_space<vmem>>, vector<1x1x8x8xbf16>,
    %33 = vector.extract_strided_slice %7 {offsets = [0, 72], sizes = [8, 8], strides = [1, 1]} : vector<8x96xf32> to vector<8x8xf32>
    %34 = arith.truncf %33 : vector<8x8xf32> to vector<8x8xbf16>
    %c0_25 = arith.constant 0 : index
    %c1_26 = arith.constant 1 : index
    %c0_27 = arith.constant 0 : index
    %c0_28 = arith.constant 0 : index
    %35 = vector.load %arg7[%c0_25, %c1_26, %c0_27, %c0_28] : memref<1x4x8x8xbf16, #tpu.memory_space<vmem>>, vector<1x1x8x8xbf16>
    %36 = vector.shape_cast %35 : vector<1x1x8x8xbf16> to vector<8x8xbf16>
    %37 = vector.shape_cast %34 : vector<8x8xbf16> to vector<1x1x8x8xbf16>
    tpu.vector_store %arg7[%c0_25, %c1_26, %c0_27, %c0_28], %37 {strides = array<i32>} : memref<1x4x8x8xbf16, #tpu.memory_space<vmem>>, vector<1x1x8x8xbf16>,
    %38 = vector.extract_strided_slice %7 {offsets = [0, 16], sizes = [8, 8], strides = [1, 1]} : vector<8x96xf32> to vector<8x8xf32>
    %39 = arith.truncf %38 : vector<8x8xf32> to vector<8x8xbf16>
    %c0_29 = arith.constant 0 : index
    %c2 = arith.constant 2 : index
    %c0_30 = arith.constant 0 : index
    %c0_31 = arith.constant 0 : index
    %40 = vector.load %arg5[%c0_29, %c2, %c0_30, %c0_31] : memref<1x4x8x8xbf16, #tpu.memory_space<vmem>>, vector<1x1x8x8xbf16>
    %41 = vector.shape_cast %40 : vector<1x1x8x8xbf16> to vector<8x8xbf16>
    %42 = vector.shape_cast %39 : vector<8x8xbf16> to vector<1x1x8x8xbf16>
    tpu.vector_store %arg5[%c0_29, %c2, %c0_30, %c0_31], %42 {strides = array<i32>} : memref<1x4x8x8xbf16, #tpu.memory_space<vmem>>, vector<1x1x8x8xbf16>,
    %43 = vector.extract_strided_slice %7 {offsets = [0, 48], sizes = [8, 8], strides = [1, 1]} : vector<8x96xf32> to vector<8x8xf32>
    %44 = arith.truncf %43 : vector<8x8xf32> to vector<8x8xbf16>
    %c0_32 = arith.constant 0 : index
    %c2_33 = arith.constant 2 : index
    %c0_34 = arith.constant 0 : index
    %c0_35 = arith.constant 0 : index
    %45 = vector.load %arg6[%c0_32, %c2_33, %c0_34, %c0_35] : memref<1x4x8x8xbf16, #tpu.memory_space<vmem>>, vector<1x1x8x8xbf16>
    %46 = vector.shape_cast %45 : vector<1x1x8x8xbf16> to vector<8x8xbf16>
    %47 = vector.shape_cast %44 : vector<8x8xbf16> to vector<1x1x8x8xbf16>
    tpu.vector_store %arg6[%c0_32, %c2_33, %c0_34, %c0_35], %47 {strides = array<i32>} : memref<1x4x8x8xbf16, #tpu.memory_space<vmem>>, vector<1x1x8x8xbf16>,
    %48 = vector.extract_strided_slice %7 {offsets = [0, 80], sizes = [8, 8], strides = [1, 1]} : vector<8x96xf32> to vector<8x8xf32>
    %49 = arith.truncf %48 : vector<8x8xf32> to vector<8x8xbf16>
    %c0_36 = arith.constant 0 : index
    %c2_37 = arith.constant 2 : index
    %c0_38 = arith.constant 0 : index
    %c0_39 = arith.constant 0 : index
    %50 = vector.load %arg7[%c0_36, %c2_37, %c0_38, %c0_39] : memref<1x4x8x8xbf16, #tpu.memory_space<vmem>>, vector<1x1x8x8xbf16>
    %51 = vector.shape_cast %50 : vector<1x1x8x8xbf16> to vector<8x8xbf16>
    %52 = vector.shape_cast %49 : vector<8x8xbf16> to vector<1x1x8x8xbf16>
    tpu.vector_store %arg7[%c0_36, %c2_37, %c0_38, %c0_39], %52 {strides = array<i32>} : memref<1x4x8x8xbf16, #tpu.memory_space<vmem>>, vector<1x1x8x8xbf16>,
    %53 = vector.extract_strided_slice %7 {offsets = [0, 24], sizes = [8, 8], strides = [1, 1]} : vector<8x96xf32> to vector<8x8xf32>
    %54 = arith.truncf %53 : vector<8x8xf32> to vector<8x8xbf16>
    %c0_40 = arith.constant 0 : index
    %c3 = arith.constant 3 : index
    %c0_41 = arith.constant 0 : index
    %c0_42 = arith.constant 0 : index
    %55 = vector.load %arg5[%c0_40, %c3, %c0_41, %c0_42] : memref<1x4x8x8xbf16, #tpu.memory_space<vmem>>, vector<1x1x8x8xbf16>
    %56 = vector.shape_cast %55 : vector<1x1x8x8xbf16> to vector<8x8xbf16>
    %57 = vector.shape_cast %54 : vector<8x8xbf16> to vector<1x1x8x8xbf16>
    tpu.vector_store %arg5[%c0_40, %c3, %c0_41, %c0_42], %57 {strides = array<i32>} : memref<1x4x8x8xbf16, #tpu.memory_space<vmem>>, vector<1x1x8x8xbf16>,
    %58 = vector.extract_strided_slice %7 {offsets = [0, 56], sizes = [8, 8], strides = [1, 1]} : vector<8x96xf32> to vector<8x8xf32>
    %59 = arith.truncf %58 : vector<8x8xf32> to vector<8x8xbf16>
    %c0_43 = arith.constant 0 : index
    %c3_44 = arith.constant 3 : index
    %c0_45 = arith.constant 0 : index
    %c0_46 = arith.constant 0 : index
    %60 = vector.load %arg6[%c0_43, %c3_44, %c0_45, %c0_46] : memref<1x4x8x8xbf16, #tpu.memory_space<vmem>>, vector<1x1x8x8xbf16>
    %61 = vector.shape_cast %60 : vector<1x1x8x8xbf16> to vector<8x8xbf16>
    %62 = vector.shape_cast %59 : vector<8x8xbf16> to vector<1x1x8x8xbf16>
    tpu.vector_store %arg6[%c0_43, %c3_44, %c0_45, %c0_46], %62 {strides = array<i32>} : memref<1x4x8x8xbf16, #tpu.memory_space<vmem>>, vector<1x1x8x8xbf16>,
    %63 = vector.extract_strided_slice %7 {offsets = [0, 88], sizes = [8, 8], strides = [1, 1]} : vector<8x96xf32> to vector<8x8xf32>
    %64 = arith.truncf %63 : vector<8x8xf32> to vector<8x8xbf16>
    %c0_47 = arith.constant 0 : index
    %c3_48 = arith.constant 3 : index
    %c0_49 = arith.constant 0 : index
    %c0_50 = arith.constant 0 : index
    %65 = vector.load %arg7[%c0_47, %c3_48, %c0_49, %c0_50] : memref<1x4x8x8xbf16, #tpu.memory_space<vmem>>, vector<1x1x8x8xbf16>
    %66 = vector.shape_cast %65 : vector<1x1x8x8xbf16> to vector<8x8xbf16>
    %67 = vector.shape_cast %64 : vector<8x8xbf16> to vector<1x1x8x8xbf16>
    tpu.vector_store %arg7[%c0_47, %c3_48, %c0_49, %c0_50], %67 {strides = array<i32>} : memref<1x4x8x8xbf16, #tpu.memory_space<vmem>>, vector<1x1x8x8xbf16>,
    return
  }
  func.func @transform_0(%arg0: i32, %arg1: i32) -> (i32, i32, i32) {
    %c0_i32 = arith.constant 0 : i32
    %c0_i32_0 = arith.constant 0 : i32
    return %arg0, %arg1, %c0_i32 : i32, i32, i32
  }
  func.func @transform_1(%arg0: i32, %arg1: i32) -> (i32, i32) {
    %c0_i32 = arith.constant 0 : i32
    %c0_i32_0 = arith.constant 0 : i32
    %c0_i32_1 = arith.constant 0 : i32
    return %c0_i32, %c0_i32_0 : i32, i32
  }
  func.func @transform_2(%arg0: i32, %arg1: i32) -> (i32, i32) {
    %c0_i32 = arith.constant 0 : i32
    %c0_i32_0 = arith.constant 0 : i32
    %c0_i32_1 = arith.constant 0 : i32
    return %c0_i32, %c0_i32_0 : i32, i32
  }
  func.func @transform_3(%arg0: i32, %arg1: i32) -> (i32, i32, i32, i32) {
    %c0_i32 = arith.constant 0 : i32
    %c0_i32_0 = arith.constant 0 : i32
    %c0_i32_1 = arith.constant 0 : i32
    return %arg0, %c0_i32, %arg1, %c0_i32_0 : i32, i32, i32, i32
  }
  func.func @transform_4(%arg0: i32, %arg1: i32) -> (i32, i32, i32, i32) {
    %c0_i32 = arith.constant 0 : i32
    %c0_i32_0 = arith.constant 0 : i32
    %c0_i32_1 = arith.constant 0 : i32
    return %arg0, %c0_i32, %arg1, %c0_i32_0 : i32, i32, i32, i32
  }
  func.func @transform_5(%arg0: i32, %arg1: i32) -> (i32, i32, i32, i32) {
    %c0_i32 = arith.constant 0 : i32
    %c0_i32_0 = arith.constant 0 : i32
    %c0_i32_1 = arith.constant 0 : i32
    return %arg0, %c0_i32, %arg1, %c0_i32_0 : i32, i32, i32, i32
  }
}

</mosaic_0001>

<llo_original>
// kernel: tpu_custom_call.1
$region0: #{tpu_custom_call.1}
  #allocation0 [shape = 'u32[]', space=smem, size = 0x4, offset = 0x4, fixed_abs, tag = 'smem constant byte address 0x4 - core index']
  #allocation1 [shape = 'u32[72,128]{1,0:T(1,128)}', space=vmem, size = 0x9000, scoped, tag = 'internal scratch']
  %s0 = inlined_call_operand.hbm [shape: f32[2,8,32], index: 0, kind: input, shape index: {}]
  %s1 = inlined_call_operand.hbm [shape: bf16[32,96], index: 1, kind: input, shape index: {}]
  %s2 = inlined_call_operand.vmem [shape: f32[1,96], index: 2, kind: input, shape index: {}]
  %s3 = inlined_call_operand.hbm [shape: bf16[2,4,8,8], index: 3, kind: output, shape index: {0}]
  %s4 = inlined_call_operand.hbm [shape: bf16[2,4,8,8], index: 4, kind: output, shape index: {1}]
  %s5 = inlined_call_operand.hbm [shape: bf16[2,4,8,8], index: 5, kind: output, shape index: {2}]
  %6 = xla_tuple %s3, %s4, %s5
  %s7 = sld [smem:[#allocation0]]
  $region69: #{tpu_custom_call.1} parent=0
    _
  %s9 = ssub.s32 1, %s7
  %s10 = scalar_select 0, %s9, %s7
  $region1: #{tpu_custom_call.1} parent=0
    #allocation2 [shape = 'u8[8192]{0}', space=vmem, size = 0x2000, scoped, tag = 'input window, operand 0']
    #allocation3 [shape = 's32[2]{0}', space=sflag, size = 0x8, scoped, tag = 'scoped memory for tpu_custom_call.1']
    #allocation4 [shape = 's32[2]{0}', space=sflag, size = 0x8, scoped, tag = 'scoped memory for tpu_custom_call.1']
    #allocation5 [shape = 'u8[8192]{0}', space=vmem, size = 0x2000, scoped, tag = 'input window, operand 1, single buffered']
    #allocation6 [shape = 's32[1]{0}', space=sflag, size = 0x4, scoped, tag = 'scoped memory for tpu_custom_call.1']
    #allocation7 [shape = 'u8[16384]{0}', space=vmem, size = 0x4000, scoped, tag = 'output window, operand 0']
    #allocation8 [shape = 'u8[16384]{0}', space=vmem, size = 0x4000, scoped, tag = 'output window, operand 1']
    #allocation9 [shape = 's32[2]{0}', space=sflag, size = 0x8, scoped, tag = 'scoped memory for tpu_custom_call.1']
    #allocation10 [shape = 'u8[16384]{0}', space=vmem, size = 0x4000, scoped, tag = 'output window, operand 2']
    %11 = vsyncpa [#allocation3], 0
    %s12 = scalar_lea.sflag [#allocation3], 1
    %13 = vsyncpa %s12, 0
    %14 = vsyncpa [#allocation6], 0
    %15 = vsyncpa [#allocation4], 0
    %s16 = scalar_lea.sflag [#allocation4], 1
    %17 = vsyncpa %s16, 0
    %18 = vsyncpa [#allocation9], 0
    %s19 = scalar_lea.sflag [#allocation9], 1
    %20 = vsyncpa %s19, 0
    loop: start=0, step=1, limit=4
    $region2: #{tpu_custom_call.1} parent=1 // loop_pre_header
      _
    $region3: #{tpu_custom_call.1} parent=1 // loop_header
      %s22 = sphi 0, %s26
      %p23 = scmp.ge.s32.totalorder %s22, 4
      %s29 = sphi 0, %s41
      %s30 = sphi 0, %s37
      %s31 = sphi 0, %s29
      %s32 = sphi 0, %s30
      %s33 = sphi 0, %s31
      %s34 = sphi 0, %s32
      %s46 = sphi 0, %s48
      %s49 = sphi 0, %s46
      %s50 = sphi 0, %s49
      %s66 = sphi 0, %s50
      %s70 = sphi 0, %s70
      %s72 = sphi 0, %s70
      %s73 = sphi 0, %s72
      %s87 = sphi 0, %s73
      %s91 = sphi 0, %s91
      %s93 = sphi 0, %s91
      %s94 = sphi 0, %s93
      %s108 = sphi 0, %s94
      %s116 = sphi 0, %s118
      %s119 = sphi 0, %s116
      %s120 = sphi 0, %s119
      %s136 = sphi 0, %s120
      %s144 = sphi 0, %s146
      %s147 = sphi 0, %s144
      %s148 = sphi 0, %s147
      %s164 = sphi 0, %s148
      %s172 = sphi 0, %s174
      %s175 = sphi 0, %s172
      %s176 = sphi 0, %s175
      %s192 = sphi 0, %s176
    $region4: #{tpu_custom_call.1} parent=1 // loop_header_branch
      %25 = sbr.rel (%p23) target = $region8
    $region5: #{tpu_custom_call.1} parent=1 // loop_body
      %s27 = ssub.s32 %s22, 1
      %s28 = ssub.s32 %s22, 2
      %s35 = sadd.s32 1, %s30
      %p36 = scmp.ge.s32.totalorder %s35, 1
      %s37 = scalar_select %p36, 0, %s35
      %s38 = sadd.s32 1, %s29
      %s39 = scalar_select %p36, %s38, %s29
      %p40 = scmp.ge.s32.totalorder %s39, 2
      %s41 = scalar_select %p40, 0, %s39
      %s42 = ssub.s32 %s29, %s41
      %s43 = ssub.s32 %s30, %s37
      %s44 = sor.u32 %s42, %s43
      %p45 = scmp.eq.s32.totalorder %s44, 0
      %s47 = sadd.s32 %s46, 1
      %s48 = scalar_select %p45, %s46, %s47
      %p51 = pneg %p45
      %p52 = scmp.eq.s32.totalorder %s22, 1
      %p53 = por %p51, %p52
      %p54 = scmp.ne.s32.totalorder %s46, %s49
      %p55 = scmp.eq.s32.totalorder %s22, 0
      %p56 = por %p54, %p55
      %p57 = scmp.ne.s32.totalorder %s46, %s49
      %p58 = scmp.eq.s32.totalorder %s27, 1
      %p59 = por %p57, %p58
      %p60 = scmp.ne.s32.totalorder %s49, %s50
      %p61 = scmp.eq.s32.totalorder %s27, 0
      %p62 = por %p60, %p61
      %p63 = scmp.ne.s32.totalorder %s49, %s50
      %p64 = scmp.eq.s32.totalorder %s28, 1
      %p65 = por %p63, %p64
      %p67 = scmp.ne.s32.totalorder %s50, %s66
      %p68 = scmp.eq.s32.totalorder %s28, 0
      %p69 = por %p67, %p68
      %s71 = sadd.s32 %s70, 1
      %p74 = scmp.eq.s32.totalorder %s22, 1
      %p75 = scmp.ne.s32.totalorder %s70, %s72
      %p76 = scmp.eq.s32.totalorder %s22, 0
      %p77 = por %p75, %p76
      %p78 = scmp.ne.s32.totalorder %s70, %s72
      %p79 = scmp.eq.s32.totalorder %s27, 1
      %p80 = por %p78, %p79
      %p81 = scmp.ne.s32.totalorder %s72, %s73
      %p82 = scmp.eq.s32.totalorder %s27, 0
      %p83 = por %p81, %p82
      %p84 = scmp.ne.s32.totalorder %s72, %s73
      %p85 = scmp.eq.s32.totalorder %s28, 1
      %p86 = por %p84, %p85
      %p88 = scmp.ne.s32.totalorder %s73, %s87
      %p89 = scmp.eq.s32.totalorder %s28, 0
      %p90 = por %p88, %p89
      %s92 = sadd.s32 %s91, 1
      %p95 = scmp.eq.s32.totalorder %s22, 1
      %p96 = scmp.ne.s32.totalorder %s91, %s93
      %p97 = scmp.eq.s32.totalorder %s22, 0
      %p98 = por %p96, %p97
      %p99 = scmp.ne.s32.totalorder %s91, %s93
      %p100 = scmp.eq.s32.totalorder %s27, 1
      %p101 = por %p99, %p100
      %p102 = scmp.ne.s32.totalorder %s93, %s94
      %p103 = scmp.eq.s32.totalorder %s27, 0
      %p104 = por %p102, %p103
      %p105 = scmp.ne.s32.totalorder %s93, %s94
      %p106 = scmp.eq.s32.totalorder %s28, 1
      %p107 = por %p105, %p106
      %p109 = scmp.ne.s32.totalorder %s94, %s108
      %p110 = scmp.eq.s32.totalorder %s28, 0
      %p111 = por %p109, %p110
      %s112 = ssub.s32 %s29, %s41
      %s113 = ssub.s32 %s30, %s37
      %s114 = sor.u32 %s112, %s113
      %p115 = scmp.eq.s32.totalorder %s114, 0
      %s117 = sadd.s32 %s116, 1
      %s118 = scalar_select %p115, %s116, %s117
      %p121 = pneg %p115
      %p122 = scmp.eq.s32.totalorder %s22, 1
      %p123 = por %p121, %p122
      %p124 = scmp.ne.s32.totalorder %s116, %s119
      %p125 = scmp.eq.s32.totalorder %s22, 0
      %p126 = por %p124, %p125
      %p127 = scmp.ne.s32.totalorder %s116, %s119
      %p128 = scmp.eq.s32.totalorder %s27, 1
      %p129 = por %p127, %p128
      %p130 = scmp.ne.s32.totalorder %s119, %s120
      %p131 = scmp.eq.s32.totalorder %s27, 0
      %p132 = por %p130, %p131
      %p133 = scmp.ne.s32.totalorder %s119, %s120
      %p134 = scmp.eq.s32.totalorder %s28, 1
      %p135 = por %p133, %p134
      %p137 = scmp.ne.s32.totalorder %s120, %s136
      %p138 = scmp.eq.s32.totalorder %s28, 0
      %p139 = por %p137, %p138
      %s140 = ssub.s32 %s29, %s41
      %s141 = ssub.s32 %s30, %s37
      %s142 = sor.u32 %s140, %s141
      %p143 = scmp.eq.s32.totalorder %s142, 0
      %s145 = sadd.s32 %s144, 1
      %s146 = scalar_select %p143, %s144, %s145
      %p149 = pneg %p143
      %p150 = scmp.eq.s32.totalorder %s22, 1
      %p151 = por %p149, %p150
      %p152 = scmp.ne.s32.totalorder %s144, %s147
      %p153 = scmp.eq.s32.totalorder %s22, 0
      %p154 = por %p152, %p153
      %p155 = scmp.ne.s32.totalorder %s144, %s147
      %p156 = scmp.eq.s32.totalorder %s27, 1
      %p157 = por %p155, %p156
      %p158 = scmp.ne.s32.totalorder %s147, %s148
      %p159 = scmp.eq.s32.totalorder %s27, 0
      %p160 = por %p158, %p159
      %p161 = scmp.ne.s32.totalorder %s147, %s148
      %p162 = scmp.eq.s32.totalorder %s28, 1
      %p163 = por %p161, %p162
      %p165 = scmp.ne.s32.totalorder %s148, %s164
      %p166 = scmp.eq.s32.totalorder %s28, 0
      %p167 = por %p165, %p166
      %s168 = ssub.s32 %s29, %s41
      %s169 = ssub.s32 %s30, %s37
      %s170 = sor.u32 %s168, %s169
      %p171 = scmp.eq.s32.totalorder %s170, 0
      %s173 = sadd.s32 %s172, 1
      %s174 = scalar_select %p171, %s172, %s173
      %p177 = pneg %p171
      %p178 = scmp.eq.s32.totalorder %s22, 1
      %p179 = por %p177, %p178
      %p180 = scmp.ne.s32.totalorder %s172, %s175
      %p181 = scmp.eq.s32.totalorder %s22, 0
      %p182 = por %p180, %p181
      %p183 = scmp.ne.s32.totalorder %s172, %s175
      %p184 = scmp.eq.s32.totalorder %s27, 1
      %p185 = por %p183, %p184
      %p186 = scmp.ne.s32.totalorder %s175, %s176
      %p187 = scmp.eq.s32.totalorder %s27, 0
      %p188 = por %p186, %p187
      %p189 = scmp.ne.s32.totalorder %s175, %s176
      %p190 = scmp.eq.s32.totalorder %s28, 1
      %p191 = por %p189, %p190
      %p193 = scmp.ne.s32.totalorder %s176, %s192
      %p194 = scmp.eq.s32.totalorder %s28, 0
      %p195 = por %p193, %p194
      %p196 = scmp.le.s32.totalorder 1, %s22
      %p197 = scmp.lt.s32.totalorder %s22, 3
      %p198 = pnand %p196, %p197
      %p199 = pneg %p198
      // Predicated region
      $region9: #{tpu_custom_call.1} parent=5 // pred_check
        _
      $region10: #{tpu_custom_call.1} parent=5 // pred_check_branch
        %201 = sbr.rel (%p198) target = $region12
      $region11: #{tpu_custom_call.1} parent=5 // pred_region
        %s202 = ssub.s32 %s22, 1
        // Predicated region
        $region13: #{tpu_custom_call.1} parent=11 // pred_check
          %p203 = pneg %p83
        $region14: #{tpu_custom_call.1} parent=11 // pred_check_branch
          %205 = sbr.rel (%p203) target = $region16
        $region15: #{tpu_custom_call.1} parent=11 // pred_region
          %207 = vsyncadd [#allocation6], 0
          %s208 = sshll.u32 %s1, 4
          %s209 = int_to_ptr.hbm [resolvable:$true] %s208
          %s210 = sshll.u32 [#allocation5], 4
          %s211 = int_to_ptr.vmem [resolvable:$true] %s210
          %216 = dma.hbm_to_vmem [thread:$0]  %s209, 256, %s211, [#allocation6], 64, 64, 4
        $region16: #{tpu_custom_call.1} parent=11 // pred_fallthru
          _
        // Predicated region
        $region17: #{tpu_custom_call.1} parent=11 // pred_check
          %p217 = pneg %p104
        $region18: #{tpu_custom_call.1} parent=11 // pred_check_branch
          %219 = sbr.rel (%p217) target = $region20
        $region19: #{tpu_custom_call.1} parent=11 // pred_region
          _
        $region20: #{tpu_custom_call.1} parent=11 // pred_fallthru
          _
      $region12: #{tpu_custom_call.1} parent=5 // pred_fallthru
        _
      %p220 = scmp.lt.s32.totalorder %s22, 2
      // Predicated region
      $region21: #{tpu_custom_call.1} parent=5 // pred_check
        %p221 = pneg %p220
      $region22: #{tpu_custom_call.1} parent=5 // pred_check_branch
        %223 = sbr.rel (%p221) target = $region24
      $region23: #{tpu_custom_call.1} parent=5 // pred_region
        // Predicated region
        $region25: #{tpu_custom_call.1} parent=23 // pred_check
          %p224 = pneg %p56
        $region26: #{tpu_custom_call.1} parent=23 // pred_check_branch
          %226 = sbr.rel (%p224) target = $region28
        $region27: #{tpu_custom_call.1} parent=23 // pred_region
          %s227 = sand.u32 %s46, 1
          %s228 = scalar_lea.sflag [#allocation3], %s227
          %s229 = sand.u32 %s46, 1
          %s230 = smul.addr %s229, 8
          %s231 = scalar_lea.vmem [#allocation2], %s230
          %233 = vsyncadd %s228, 0
          %s234 = sadd.s32 %s30, %s29
          %s235 = smul.addr %s234, 8
          %s236 = scalar_lea.hbm %s0, %s235
          %s238 = sshll.u32 %s236, 4
          %s239 = int_to_ptr.hbm [resolvable:$true] %s238
          %s240 = sshll.u32 %s231, 4
          %s241 = int_to_ptr.vmem [resolvable:$true] %s240
          %243 = dma.hbm_to_vmem [thread:$0]  %s239, 128, %s241, %s228
        $region28: #{tpu_custom_call.1} parent=23 // pred_fallthru
          _
      $region24: #{tpu_custom_call.1} parent=5 // pred_fallthru
        _
      %p244 = scmp.le.s32.totalorder 1, %s22
      %p245 = scmp.lt.s32.totalorder %s22, 3
      %p246 = pnand %p244, %p245
      %p247 = pneg %p246
      // Predicated region
      $region29: #{tpu_custom_call.1} parent=5 // pred_check
        _
      $region30: #{tpu_custom_call.1} parent=5 // pred_check_branch
        %249 = sbr.rel (%p246) target = $region32
      $region31: #{tpu_custom_call.1} parent=5 // pred_region
        %s250 = ssub.s32 %s22, 1
        %s251 = sand.u32 %s49, 1
        %s252 = scalar_lea.sflag [#allocation3], %s251
        %s253 = sand.u32 %s49, 1
        %s254 = smul.addr %s253, 8
        %s255 = scalar_lea.vmem [#allocation2], %s254
        // Predicated region
        $region33: #{tpu_custom_call.1} parent=31 // pred_check
          %p256 = pneg %p62
        $region34: #{tpu_custom_call.1} parent=31 // pred_check_branch
          %258 = sbr.rel (%p256) target = $region36
        $region35: #{tpu_custom_call.1} parent=31 // pred_region
          %260 = dma.done %s252, 128
        $region36: #{tpu_custom_call.1} parent=31 // pred_fallthru
          _
        // Predicated region
        $region37: #{tpu_custom_call.1} parent=31 // pred_check
          %p261 = pneg %p83
        $region38: #{tpu_custom_call.1} parent=31 // pred_check_branch
          %263 = sbr.rel (%p261) target = $region40
        $region39: #{tpu_custom_call.1} parent=31 // pred_region
          %265 = dma.done [#allocation6], 256
        $region40: #{tpu_custom_call.1} parent=31 // pred_fallthru
          _
        %s266 = sand.u32 %s49, 1
        %s267 = scalar_lea.sflag [#allocation3], %s266
        %s268 = sand.u32 %s49, 1
        %s269 = smul.addr %s268, 8
        %s270 = scalar_lea.vmem [#allocation2], %s269
        %p271 = pneg %p62
        %p272 = pneg %p59
        %p273 = pneg %p83
        %p274 = pneg %p80
        %p275 = pneg %p104
        %p276 = pneg %p101
        %p277 = pneg %p132
        %p278 = pneg %p129
        %s279 = sand.u32 %s119, 1
        %s280 = scalar_lea.sflag [#allocation4], %s279
        %s281 = sand.u32 %s119, 1
        %s282 = smul.addr %s281, 16
        %s283 = scalar_lea.vmem [#allocation7], %s282
        %p284 = pneg %p160
        %p285 = pneg %p157
        %s286 = sand.u32 %s27, 1
        %s287 = scalar_lea.sflag [#allocation9], %s286
        %s288 = sand.u32 %s147, 1
        %s289 = smul.addr %s288, 16
        %s290 = scalar_lea.vmem [#allocation8], %s289
        %p291 = pneg %p188
        %p292 = pneg %p185
        %s293 = sand.u32 %s27, 1
        %s294 = scalar_lea.sflag [#allocation9], %s293
        %s295 = sand.u32 %s175, 1
        %s296 = smul.addr %s295, 16
        %s297 = scalar_lea.vmem [#allocation10], %s296
        %v299 = vld [vmem:[%s255] sm:$0xff]
        %v300 = vpack.c.bf16 %v299, %v299
        %v301 = vld [vmem:[#allocation5] sm:$0xf]
        %v302 = vld [vmem:[#allocation5 + $0x4] sm:$0xf]
        %v303 = vld [vmem:[#allocation5 + $0x8] sm:$0xf]
        %v304 = vld [vmem:[#allocation5 + $0xc] sm:$0xf]
        %v305 = vld [vmem:[%s2] sm:$0x1]
        %v307 = vperm.slane %v305, 0
        %v313 = vunpack.c.l.b16 %v301
        %v314 = vunpack.c.l.b16 %v302
        %v315 = vunpack.c.l.b16 %v303
        %v316 = vunpack.c.l.b16 %v304
        %v317 = vpack.c.b16 %v314, %v313
        %v318 = vpack.c.b16 %v316, %v315
        %vm321 = vcmask 261120
        %v323 = vsel %vm321, %v300, 0
        %325 = vmatpush.bf16.msra.mxu0 0
        %326 = vmatpush.bf16.msra.mxu0 0
        %327 = vmatpush.bf16.msra.mxu0 0
        %328 = vmatpush.bf16.msra.mxu0 0
        %329 = vmatpush.bf16.msra.mxu0 0
        %330 = vmatpush.bf16.msra.mxu0 0
        %331 = vmatpush.bf16.msra.mxu0 %v318
        %332 = vmatpush.bf16.msra.mxu0 %v317
        %333 = vmatmul.bf16.gmra.mxu0 %v323
        %v334 = vpop.f32.mrf.mxu0
        %v335 = vadd.f32 %v307, %v334
        %v336 = vpop.f32.mrf.mxu0
        %337 = vdwg.mxu0
        %v338 = vpack.c.bf16 %v335, %v335
        %vm339 = vcmask 60416
        %340 = vst.msk [vmem:[%s283] sm:$0xf] %vm339, %v338
        %342 = vrot.lane.b32.xlu0 %v338, 96
        %v343 = vpop.permute.xlu0 %342
        %345 = vst.msk [vmem:[%s290] sm:$0xf] %vm339, %v343
        %346 = vrot.lane.b32.xlu0 %v338, 64
        %v347 = vpop.permute.xlu0 %346
        %349 = vst.msk [vmem:[%s297] sm:$0xf] %vm339, %v347
        %350 = vrot.lane.b32.xlu0 %v338, 120
        %v351 = vpop.permute.xlu0 %350
        %s353 = scalar_lea.vmem %s283, 4 [#allocation7]
        %354 = vst.msk [vmem:[%s353] sm:$0xf] %vm339, %v351
        %355 = vrot.lane.b32.xlu0 %v338, 88
        %v356 = vpop.permute.xlu0 %355
        %s358 = scalar_lea.vmem %s290, 4 [#allocation8]
        %359 = vst.msk [vmem:[%s358] sm:$0xf] %vm339, %v356
        %360 = vrot.lane.b32.xlu0 %v338, 56
        %v361 = vpop.permute.xlu0 %360
        %s363 = scalar_lea.vmem %s297, 4 [#allocation10]
        %364 = vst.msk [vmem:[%s363] sm:$0xf] %vm339, %v361
        %365 = vrot.lane.b32.xlu0 %v338, 112
        %v366 = vpop.permute.xlu0 %365
        %s368 = scalar_lea.vmem %s283, 8 [#allocation7]
        %369 = vst.msk [vmem:[%s368] sm:$0xf] %vm339, %v366
        %370 = vrot.lane.b32.xlu0 %v338, 80
        %v371 = vpop.permute.xlu0 %370
        %s373 = scalar_lea.vmem %s290, 8 [#allocation8]
        %374 = vst.msk [vmem:[%s373] sm:$0xf] %vm339, %v371
        %375 = vrot.lane.b32.xlu0 %v338, 48
        %v376 = vpop.permute.xlu0 %375
        %s378 = scalar_lea.vmem %s297, 8 [#allocation10]
        %379 = vst.msk [vmem:[%s378] sm:$0xf] %vm339, %v376
        %380 = vrot.lane.b32.xlu0 %v338, 104
        %v381 = vpop.permute.xlu0 %380
        %s383 = scalar_lea.vmem %s283, 12 [#allocation7]
        %384 = vst.msk [vmem:[%s383] sm:$0xf] %vm339, %v381
        %385 = vrot.lane.b32.xlu0 %v338, 72
        %v386 = vpop.permute.xlu0 %385
        %s388 = scalar_lea.vmem %s290, 12 [#allocation8]
        %389 = vst.msk [vmem:[%s388] sm:$0xf] %vm339, %v386
        %390 = vrot.lane.b32.xlu0 %v338, 40
        %v391 = vpop.permute.xlu0 %390
        %s393 = scalar_lea.vmem %s297, 12 [#allocation10]
        %394 = vst.msk [vmem:[%s393] sm:$0xf] %vm339, %v391
        %s395 = sand.u32 %s119, 1
        %s396 = scalar_lea.sflag [#allocation4], %s395
        %s397 = sand.u32 %s119, 1
        %s398 = smul.addr %s397, 16
        %s399 = scalar_lea.vmem [#allocation7], %s398
        %s400 = sand.u32 %s27, 1
        %s401 = scalar_lea.sflag [#allocation9], %s400
        %s402 = sand.u32 %s147, 1
        %s403 = smul.addr %s402, 16
        %s404 = scalar_lea.vmem [#allocation8], %s403
        %s405 = sand.u32 %s27, 1
        %s406 = scalar_lea.sflag [#allocation9], %s405
        %s407 = sand.u32 %s175, 1
        %s408 = smul.addr %s407, 16
        %s409 = scalar_lea.vmem [#allocation10], %s408
        // Predicated region
        $region41: #{tpu_custom_call.1} parent=31 // pred_check
          %p410 = pneg %p129
        $region42: #{tpu_custom_call.1} parent=31 // pred_check_branch
          %412 = sbr.rel (%p410) target = $region44
        $region43: #{tpu_custom_call.1} parent=31 // pred_region
          %414 = vsyncadd %s396, 0
          %s415 = smul.addr %s31, 4
          %s416 = sadd.s32 %s32, %s415
          %s417 = smul.addr %s416, 4
          %s418 = scalar_lea.hbm %s3, %s417
          %s419 = sshll.u32 %s399, 4
          %s420 = int_to_ptr.vmem [resolvable:$true] %s419
          %s421 = sshll.u32 %s418, 4
          %s422 = int_to_ptr.hbm [resolvable:$true] %s421
          %427 = dma.vmem_to_hbm [thread:$0]  %s420, 256, %s422, %s396, 64, 64, 4
        $region44: #{tpu_custom_call.1} parent=31 // pred_fallthru
          _
        // Predicated region
        $region45: #{tpu_custom_call.1} parent=31 // pred_check
          %p428 = pneg %p157
        $region46: #{tpu_custom_call.1} parent=31 // pred_check_branch
          %430 = sbr.rel (%p428) target = $region48
        $region47: #{tpu_custom_call.1} parent=31 // pred_region
          %432 = vsyncadd %s401, 0
          %s433 = smul.addr %s31, 4
          %s434 = sadd.s32 %s32, %s433
          %s435 = smul.addr %s434, 4
          %s436 = scalar_lea.hbm %s4, %s435
          %s437 = sshll.u32 %s404, 4
          %s438 = int_to_ptr.vmem [resolvable:$true] %s437
          %s439 = sshll.u32 %s436, 4
          %s440 = int_to_ptr.hbm [resolvable:$true] %s439
          %445 = dma.vmem_to_hbm [thread:$0]  %s438, 256, %s440, %s401, 64, 64, 4
        $region48: #{tpu_custom_call.1} parent=31 // pred_fallthru
          _
        // Predicated region
        $region49: #{tpu_custom_call.1} parent=31 // pred_check
          %p446 = pneg %p185
        $region50: #{tpu_custom_call.1} parent=31 // pred_check_branch
          %448 = sbr.rel (%p446) target = $region52
        $region51: #{tpu_custom_call.1} parent=31 // pred_region
          %450 = vsyncadd %s406, 0
          %s451 = smul.addr %s31, 4
          %s452 = sadd.s32 %s32, %s451
          %s453 = smul.addr %s452, 4
          %s454 = scalar_lea.hbm %s5, %s453
          %s455 = sshll.u32 %s409, 4
          %s456 = int_to_ptr.vmem [resolvable:$true] %s455
          %s457 = sshll.u32 %s454, 4
          %s458 = int_to_ptr.hbm [resolvable:$true] %s457
          %463 = dma.vmem_to_hbm [thread:$0]  %s456, 256, %s458, %s406, 64, 64, 4
        $region52: #{tpu_custom_call.1} parent=31 // pred_fallthru
          _
      $region32: #{tpu_custom_call.1} parent=5 // pred_fallthru
        _
      %p464 = scmp.le.s32.totalorder 2, %s22
      // Predicated region
      $region53: #{tpu_custom_call.1} parent=5 // pred_check
        %p465 = pneg %p464
      $region54: #{tpu_custom_call.1} parent=5 // pred_check_branch
        %467 = sbr.rel (%p465) target = $region56
      $region55: #{tpu_custom_call.1} parent=5 // pred_region
        %s468 = ssub.s32 %s22, 2
        // Predicated region
        $region57: #{tpu_custom_call.1} parent=55 // pred_check
          %p469 = pneg %p135
        $region58: #{tpu_custom_call.1} parent=55 // pred_check_branch
          %471 = sbr.rel (%p469) target = $region60
        $region59: #{tpu_custom_call.1} parent=55 // pred_region
          %s472 = sand.u32 %s120, 1
          %s473 = scalar_lea.sflag [#allocation4], %s472
          %s474 = sand.u32 %s120, 1
          %s475 = smul.addr %s474, 16
          %s476 = scalar_lea.vmem [#allocation7], %s475
          %478 = dma.done %s473, 256
        $region60: #{tpu_custom_call.1} parent=55 // pred_fallthru
          _
        // Predicated region
        $region61: #{tpu_custom_call.1} parent=55 // pred_check
          %p479 = pneg %p163
        $region62: #{tpu_custom_call.1} parent=55 // pred_check_branch
          %481 = sbr.rel (%p479) target = $region64
        $region63: #{tpu_custom_call.1} parent=55 // pred_region
          %s482 = sand.u32 %s28, 1
          %s483 = scalar_lea.sflag [#allocation9], %s482
          %s484 = sand.u32 %s148, 1
          %s485 = smul.addr %s484, 16
          %s486 = scalar_lea.vmem [#allocation8], %s485
          %488 = dma.done %s483, 256
        $region64: #{tpu_custom_call.1} parent=55 // pred_fallthru
          _
        // Predicated region
        $region65: #{tpu_custom_call.1} parent=55 // pred_check
          %p489 = pneg %p191
        $region66: #{tpu_custom_call.1} parent=55 // pred_check_branch
          %491 = sbr.rel (%p489) target = $region68
        $region67: #{tpu_custom_call.1} parent=55 // pred_region
          %s492 = sand.u32 %s28, 1
          %s493 = scalar_lea.sflag [#allocation9], %s492
          %s494 = sand.u32 %s176, 1
          %s495 = smul.addr %s494, 16
          %s496 = scalar_lea.vmem [#allocation10], %s495
          %498 = dma.done %s493, 256
        $region68: #{tpu_custom_call.1} parent=55 // pred_fallthru
          _
      $region56: #{tpu_custom_call.1} parent=5 // pred_fallthru
        _
    $region6: #{tpu_custom_call.1} parent=1 // loop_footer
      %s26 = sadd.s32 1, %s22
    $region7: #{tpu_custom_call.1} parent=1 // loop_footer_branch
      %21 = sbr.rel target = $region3
    $region8: #{tpu_custom_call.1} parent=1 // loop_exit
      _
    %499 = vsyncpa [#allocation3], 1
    %s500 = scalar_lea.sflag [#allocation3], 1
    %501 = vsyncpa %s500, 1
    %502 = vsyncpa [#allocation6], 1
    %503 = vsyncpa [#allocation4], 1
    %s504 = scalar_lea.sflag [#allocation4], 1
    %505 = vsyncpa %s504, 1
    %506 = vsyncpa [#allocation9], 1
    %s507 = scalar_lea.sflag [#allocation9], 1
    %508 = vsyncpa %s507, 1

</llo_original>
